<compile_context>
chip_gen: v6e
topology: v6e:2x2x1
jax: 0.10.0
libtpu: 0.0.40
codegen_flags: <defaults>
</compile_context>

<pallas_src>
import functools

import jax
import jax.numpy as jnp
from jax.experimental import pallas as pl
from jax.experimental.pallas import tpu as pltpu

HIDDEN = 60


def actor_kernel(x_ref, w1_ref, b1_ref, w2_ref, b2_ref, out_ref, *, a_bound):
    # Layer 1: MXU matmul with f32 accumulation, bias add + relu on the VPU
    # (free filler slots next to the MXU work), all in f32.
    h = jnp.maximum(
        jnp.dot(x_ref[...], w1_ref[...], preferred_element_type=jnp.float32)
        + b1_ref[...],
        0.0)
    # Layer 2: feed the MXU at the weight dtype (bf16 when the activation
    # stream is bf16), accumulate in f32, keep the tanh/scale epilogue f32.
    y = jnp.tanh(
        jnp.dot(h.astype(w2_ref.dtype), w2_ref[...],
                preferred_element_type=jnp.float32)
        + b2_ref[...])
    out_ref[...] = (y * a_bound).astype(out_ref.dtype)


def _round_up(x, m):
    return ((x + m - 1) // m) * m


def actor_forward(state, params, a_bound, *, tb=None,
                  activation_dtype=jnp.float32):
    """state: (B, s_dim) float32. Returns (B, a_dim) float32 actions."""
    w1t, b1, w2t, b2 = params
    B, s_dim = state.shape
    a_dim = w2t.shape[1]
    assert w1t.shape == (s_dim, HIDDEN)

    # Cast only the big streams (activations + matching weights); biases and
    # the whole epilogue stay f32 (v5e has no bf16 VPU/EUP datapath).
    x = state.astype(activation_dtype)
    w1c = w1t.astype(activation_dtype)
    w2c = w2t.astype(activation_dtype)

    # Pad only to the 8-row sublane multiple (no-op for typical replay
    # batches); never pad up to a full tile.
    bp = _round_up(B, 8)
    if bp != B:
        x = jnp.pad(x, ((0, bp - B), (0, 0)))

    if tb is None:
        # >= 2 parallel grid steps so v7x's two TensorCores both get work,
        # capped at 4096 rows/tile to amortize per-step overhead at large B.
        tb = max(8, min(4096, _round_up(pl.cdiv(bp, 2), 8)))
    tb = min(tb, bp)

    out = pl.pallas_call(
        functools.partial(actor_kernel, a_bound=float(a_bound)),
        out_shape=jax.ShapeDtypeStruct((bp, a_dim), jnp.float32),
        grid=(pl.cdiv(bp, tb),),                            # partial last tile OK
        in_specs=[
            pl.BlockSpec((tb, s_dim), lambda i: (i, 0)),    # activations: tiled
            pl.BlockSpec((s_dim, HIDDEN), lambda i: (0, 0)),  # weights: resident
            pl.BlockSpec((1, HIDDEN), lambda i: (0, 0)),      # b1: resident
            pl.BlockSpec((HIDDEN, a_dim), lambda i: (0, 0)),  # w2: resident
            pl.BlockSpec((1, a_dim), lambda i: (0, 0)),       # b2: resident
        ],
        out_specs=pl.BlockSpec((tb, a_dim), lambda i: (i, 0)),
        compiler_params=pltpu.CompilerParams(
            dimension_semantics=("parallel",)),
    )(x, w1c, b1, w2c, b2)
    # Rows past B (sublane pad / partial-tile overhang) are undefined -> drop.
    return out[:B]


def init_params(key, s_dim, a_dim):
    """Matches Actor.__init__: weights ~ N(0, 0.1), biases ~ U(+-1/sqrt(fan_in))."""
    ks = jax.random.split(key, 4)

    def bias(k, fan_in, n):
        bound = 1.0 / jnp.sqrt(jnp.float32(fan_in))
        return jax.random.uniform(k, (1, n), jnp.float32, -bound, bound)

    w1 = 0.1 * jax.random.normal(ks[0], (HIDDEN, s_dim), jnp.float32)  # fa1.weight
    b1 = bias(ks[1], s_dim, HIDDEN)                                    # fa1.bias
    w2 = 0.1 * jax.random.normal(ks[2], (a_dim, HIDDEN), jnp.float32)  # fa2.weight
    b2 = bias(ks[3], HIDDEN, a_dim)                                    # fa2.bias

    # Pre-transpose to (in, out) so the kernel does plain x @ W.
    return (w1.T, b1, w2.T, b2)


def actor_ref(state, params, a_bound):
    w1t, b1, w2t, b2 = params
    h = jax.nn.relu(state @ w1t + b1)
    return jnp.tanh(h @ w2t + b2) * a_bound


if __name__ == "__main__":
    s_dim, a_dim, batch = 16, 8, 2
    a_bound = 2.0
    key = jax.random.PRNGKey(0)
    k_state, k_params = jax.random.split(key)

    state = jax.random.normal(k_state, (batch, s_dim), jnp.float32)
    params = init_params(k_params, s_dim, a_dim)
    ref = actor_ref(state, params, a_bound)

    # f32 path (tight tolerance).
    out = actor_forward(state, params, a_bound)
    jax.block_until_ready(out)
    assert out.shape == (batch, a_dim), out.shape
    assert jnp.allclose(out, ref, atol=1e-4, rtol=1e-5), (out, ref)

    # bf16 activation-stream path (v6e/v7x bandwidth win), looser tolerance.
    out_bf16 = actor_forward(state, params, a_bound,
                             activation_dtype=jnp.bfloat16)
    jax.block_until_ready(out_bf16)
    assert jnp.allclose(out_bf16, ref, atol=5e-2, rtol=0), (out_bf16, ref)

    # Larger batch exercising >=2 grid steps and a partial last tile (no pad-to-tb).
    big_state = jax.random.normal(k_state, (600, s_dim), jnp.float32)
    out_big = actor_forward(big_state, params, a_bound)
    jax.block_until_ready(out_big)
    ref_big = actor_ref(big_state, params, a_bound)
    assert jnp.allclose(out_big, ref_big, atol=1e-4, rtol=1e-5)

    print("KERNEL_OK")
</pallas_src>

<mosaic_0001>
module attributes {stable_mosaic.version = 11 : i64} {
  func.func @actor_kernel(%arg0: i32, %arg1: memref<8x16xf32, #tpu.memory_space<vmem>>, %arg2: memref<16x60xf32, #tpu.memory_space<vmem>>, %arg3: memref<1x60xf32, #tpu.memory_space<vmem>>, %arg4: memref<60x8xf32, #tpu.memory_space<vmem>>, %arg5: memref<1x8xf32, #tpu.memory_space<vmem>>, %arg6: memref<8x8xf32, #tpu.memory_space<vmem>>) attributes {dimension_semantics = [#tpu.dimension_semantics<parallel>], iteration_bounds = array<i64: 1>, scalar_prefetch = 0 : i64, scratch_operands = 0 : i64, tpu.core_type = #tpu.core_type<tc>, window_params = [{transform_indices = @transform_0, window_bounds = array<i64: 8, 16>}, {pipeline_mode = #tpu.pipeline_mode<synchronous>, transform_indices = @transform_1, window_bounds = array<i64: 16, 60>}, {pipeline_mode = #tpu.pipeline_mode<synchronous>, transform_indices = @transform_2, window_bounds = array<i64: 1, 60>}, {pipeline_mode = #tpu.pipeline_mode<synchronous>, transform_indices = @transform_3, window_bounds = array<i64: 60, 8>}, {pipeline_mode = #tpu.pipeline_mode<synchronous>, transform_indices = @transform_4, window_bounds = array<i64: 1, 8>}, {transform_indices = @transform_5, window_bounds = array<i64: 8, 8>}]} {
    %c0 = arith.constant 0 : index
    %c0_0 = arith.constant 0 : index
    %0 = vector.load %arg1[%c0, %c0_0] : memref<8x16xf32, #tpu.memory_space<vmem>>, vector<8x16xf32>
    %c0_1 = arith.constant 0 : index
    %c0_2 = arith.constant 0 : index
    %1 = vector.load %arg2[%c0_1, %c0_2] : memref<16x60xf32, #tpu.memory_space<vmem>>, vector<16x60xf32>
    %cst = arith.constant dense<0.000000e+00> : vector<8x60xf32>
    %2 = tpu.matmul %0, %1, %cst {dimension_numbers = #tpu.dot_dimension_numbers<[1], [0], [0], [1], [0, 0, 1, 1], [], []>} : vector<8x16xf32>, vector<16x60xf32>, vector<8x60xf32> -> vector<8x60xf32>
    %c0_3 = arith.constant 0 : index
    %c0_4 = arith.constant 0 : index
    %3 = vector.load %arg3[%c0_3, %c0_4] : memref<1x60xf32, #tpu.memory_space<vmem>>, vector<1x60xf32>
    %4 = vector.broadcast %3 : vector<1x60xf32> to vector<8x60xf32>
    %5 = arith.addf %2, %4 : vector<8x60xf32>
    %cst_5 = arith.constant 0.000000e+00 : f32
    %6 = vector.broadcast %cst_5 : f32 to vector<8x60xf32>
    %7 = arith.maximumf %5, %6 : vector<8x60xf32>
    %c0_6 = arith.constant 0 : index
    %c0_7 = arith.constant 0 : index
    %8 = vector.load %arg4[%c0_6, %c0_7] : memref<60x8xf32, #tpu.memory_space<vmem>>, vector<60x8xf32>
    %cst_8 = arith.constant dense<0.000000e+00> : vector<8x8xf32>
    %9 = tpu.matmul %7, %8, %cst_8 {dimension_numbers = #tpu.dot_dimension_numbers<[1], [0], [0], [1], [0, 0, 1, 1], [], []>} : vector<8x60xf32>, vector<60x8xf32>, vector<8x8xf32> -> vector<8x8xf32>
    %c0_9 = arith.constant 0 : index
    %c0_10 = arith.constant 0 : index
    %10 = vector.load %arg5[%c0_9, %c0_10] : memref<1x8xf32, #tpu.memory_space<vmem>>, vector<1x8xf32>
    %11 = vector.broadcast %10 : vector<1x8xf32> to vector<8x8xf32>
    %12 = arith.addf %9, %11 : vector<8x8xf32>
    %13 = math.tanh %12 : vector<8x8xf32>
    %cst_11 = arith.constant 2.000000e+00 : f32
    %14 = vector.broadcast %cst_11 : f32 to vector<8x8xf32>
    %15 = arith.mulf %13, %14 : vector<8x8xf32>
    %c0_12 = arith.constant 0 : index
    %c0_13 = arith.constant 0 : index
    %16 = vector.load %arg6[%c0_12, %c0_13] : memref<8x8xf32, #tpu.memory_space<vmem>>, vector<8x8xf32>
    tpu.vector_store %arg6[%c0_12, %c0_13], %15 {strides = array<i32>} : memref<8x8xf32, #tpu.memory_space<vmem>>, vector<8x8xf32>,
    return
  }
  func.func @transform_0(%arg0: i32) -> (i32, i32) {
    %c0_i32 = arith.constant 0 : i32
    %c0_i32_0 = arith.constant 0 : i32
    return %arg0, %c0_i32 : i32, i32
  }
  func.func @transform_1(%arg0: i32) -> (i32, i32) {
    %c0_i32 = arith.constant 0 : i32
    %c0_i32_0 = arith.constant 0 : i32
    %c0_i32_1 = arith.constant 0 : i32
    return %c0_i32, %c0_i32_0 : i32, i32
  }
  func.func @transform_2(%arg0: i32) -> (i32, i32) {
    %c0_i32 = arith.constant 0 : i32
    %c0_i32_0 = arith.constant 0 : i32
    %c0_i32_1 = arith.constant 0 : i32
    return %c0_i32, %c0_i32_0 : i32, i32
  }
  func.func @transform_3(%arg0: i32) -> (i32, i32) {
    %c0_i32 = arith.constant 0 : i32
    %c0_i32_0 = arith.constant 0 : i32
    %c0_i32_1 = arith.constant 0 : i32
    return %c0_i32, %c0_i32_0 : i32, i32
  }
  func.func @transform_4(%arg0: i32) -> (i32, i32) {
    %c0_i32 = arith.constant 0 : i32
    %c0_i32_0 = arith.constant 0 : i32
    %c0_i32_1 = arith.constant 0 : i32
    return %c0_i32, %c0_i32_0 : i32, i32
  }
  func.func @transform_5(%arg0: i32) -> (i32, i32) {
    %c0_i32 = arith.constant 0 : i32
    %c0_i32_0 = arith.constant 0 : i32
    return %arg0, %c0_i32 : i32, i32
  }
}

</mosaic_0001>

<llo_original>
// kernel: tpu_custom_call.1
$region0: #{tpu_custom_call.1}
  #allocation0 [shape = 'u32[]', space=smem, size = 0x4, offset = 0x4, fixed_abs, tag = 'smem constant byte address 0x4 - core index']
  #allocation1 [shape = 'u32[144,128]{1,0:T(1,128)}', space=vmem, size = 0x12000, scoped, tag = 'internal scratch']
  %s0 = inlined_call_operand.vmem [shape: f32[8,16], index: 0, kind: input, shape index: {}]
  %s1 = inlined_call_operand.vmem [shape: f32[16,60], index: 1, kind: input, shape index: {}]
  %s2 = inlined_call_operand.vmem [shape: f32[1,60], index: 2, kind: input, shape index: {}]
  %s3 = inlined_call_operand.vmem [shape: f32[60,8], index: 3, kind: input, shape index: {}]
  %s4 = inlined_call_operand.vmem [shape: f32[1,8], index: 4, kind: input, shape index: {}]
  %s5 = inlined_call_operand.hbm [shape: f32[8,8], index: 5, kind: output, shape index: {}]
  %s6 = sld [smem:[#allocation0]]
  $region30: #{tpu_custom_call.1} parent=0
    _
  %s8 = ssub.s32 1, %s6
  %s9 = scalar_select 0, %s8, %s6
  $region1: #{tpu_custom_call.1} parent=0
    #allocation2 [shape = 'u8[4096]{0}', space=vmem, size = 0x1000, scoped, tag = 'output window, operand 0, single buffered']
    #allocation3 [shape = 's32[1]{0}', space=sflag, size = 0x4, scoped, tag = 'scoped memory for tpu_custom_call.1']
    %10 = vsyncpa [#allocation3], 0
    // Predicated region
    $region2: #{tpu_custom_call.1} parent=1 // pred_check
      _
    $region3: #{tpu_custom_call.1} parent=1 // pred_check_branch
      %12 = sbr.rel (0) target = $region5
    $region4: #{tpu_custom_call.1} parent=1 // pred_region
      _
    $region5: #{tpu_custom_call.1} parent=1 // pred_fallthru
      _
    // Predicated region
    $region6: #{tpu_custom_call.1} parent=1 // pred_check
      _
    $region7: #{tpu_custom_call.1} parent=1 // pred_check_branch
      %14 = sbr.rel (0) target = $region9
    $region8: #{tpu_custom_call.1} parent=1 // pred_region
      _
    $region9: #{tpu_custom_call.1} parent=1 // pred_fallthru
      _
    // Predicated region
    $region10: #{tpu_custom_call.1} parent=1 // pred_check
      _
    $region11: #{tpu_custom_call.1} parent=1 // pred_check_branch
      %16 = sbr.rel (0) target = $region13
    $region12: #{tpu_custom_call.1} parent=1 // pred_region
      _
    $region13: #{tpu_custom_call.1} parent=1 // pred_fallthru
      _
    // Predicated region
    $region14: #{tpu_custom_call.1} parent=1 // pred_check
      _
    $region15: #{tpu_custom_call.1} parent=1 // pred_check_branch
      %18 = sbr.rel (0) target = $region17
    $region16: #{tpu_custom_call.1} parent=1 // pred_region
      _
    $region17: #{tpu_custom_call.1} parent=1 // pred_fallthru
      _
    // Predicated region
    $region18: #{tpu_custom_call.1} parent=1 // pred_check
      _
    $region19: #{tpu_custom_call.1} parent=1 // pred_check_branch
      %20 = sbr.rel (0) target = $region21
    $region20: #{tpu_custom_call.1} parent=1 // pred_region
      _
    $region21: #{tpu_custom_call.1} parent=1 // pred_fallthru
      _
    %v21 = vld [vmem:[%s0] sm:$0xff]
    %v22 = vld [vmem:[%s1] sm:$0xff]
    %v23 = vld [vmem:[%s1 + $0x8] sm:$0xff]
    %v24 = vld [vmem:[%s2] sm:$0x1]
    %v26 = vlaneseq
    %v27 = vshrl.u32 %v26, 7
    %v28 = vsub.s32 0, %v27
    %v29 = vrot.slane %v24, %v28
    %vm31 = vcmask 130048
    %v33 = vsel %vm31, %v21, 0
    %35 = vmatprep.subr.mxu0 0.0
    %36 = vmatpush1.msra.mxu0 0.0
    %37 = vmatprep.subr.mxu0 0.0
    %38 = vmatpush1.msra.mxu0 0.0
    %39 = vmatprep.subr.mxu0 0.0
    %40 = vmatpush1.msra.mxu0 0.0
    %41 = vmatprep.subr.mxu0 0.0
    %42 = vmatpush1.msra.mxu0 0.0
    %43 = vmatprep.subr.mxu0 0.0
    %44 = vmatpush1.msra.mxu0 0.0
    %45 = vmatprep.subr.mxu0 0.0
    %46 = vmatpush1.msra.mxu0 0.0
    %47 = vmatprep.subr.mxu0 0.0
    %48 = vmatpush1.msra.mxu0 0.0
    %49 = vmatprep.subr.mxu0 0.0
    %50 = vmatpush1.msra.mxu0 0.0
    %51 = vmatprep.subr.mxu0 0.0
    %52 = vmatpush1.msra.mxu0 0.0
    %53 = vmatprep.subr.mxu0 0.0
    %54 = vmatpush1.msra.mxu0 0.0
    %55 = vmatprep.subr.mxu0 0.0
    %56 = vmatpush1.msra.mxu0 0.0
    %57 = vmatprep.subr.mxu0 0.0
    %58 = vmatpush1.msra.mxu0 0.0
    %59 = vmatprep.subr.mxu0 0.0
    %60 = vmatpush1.msra.mxu0 0.0
    %61 = vmatprep.subr.mxu0 0.0
    %62 = vmatpush1.msra.mxu0 0.0
    %63 = vmatprep.subr.mxu0 0.0
    %64 = vmatpush1.msra.mxu0 %v23
    %65 = vmatprep.subr.mxu0 0.0
    %66 = vmatpush1.msra.mxu0 %v22
    %67 = vmatprep.subr.mxu0 0.0
    %68 = vmatpush2.msra.mxu0 0.0
    %69 = vmatprep.subr.mxu0 0.0
    %70 = vmatpush2.msra.mxu0 0.0
    %71 = vmatprep.subr.mxu0 0.0
    %72 = vmatpush2.msra.mxu0 0.0
    %73 = vmatprep.subr.mxu0 0.0
    %74 = vmatpush2.msra.mxu0 0.0
    %75 = vmatprep.subr.mxu0 0.0
    %76 = vmatpush2.msra.mxu0 0.0
    %77 = vmatprep.subr.mxu0 0.0
    %78 = vmatpush2.msra.mxu0 0.0
    %79 = vmatprep.subr.mxu0 0.0
    %80 = vmatpush2.msra.mxu0 0.0
    %81 = vmatprep.subr.mxu0 0.0
    %82 = vmatpush2.msra.mxu0 0.0
    %83 = vmatprep.subr.mxu0 0.0
    %84 = vmatpush2.msra.mxu0 0.0
    %85 = vmatprep.subr.mxu0 0.0
    %86 = vmatpush2.msra.mxu0 0.0
    %87 = vmatprep.subr.mxu0 0.0
    %88 = vmatpush2.msra.mxu0 0.0
    %89 = vmatprep.subr.mxu0 0.0
    %90 = vmatpush2.msra.mxu0 0.0
    %91 = vmatprep.subr.mxu0 0.0
    %92 = vmatpush2.msra.mxu0 0.0
    %93 = vmatprep.subr.mxu0 0.0
    %94 = vmatpush2.msra.mxu0 0.0
    %95 = vmatprep.subr.mxu0 0.0
    %96 = vmatpush2.msra.mxu0 0.0
    %97 = vmatprep.subr.mxu0 0.0
    %98 = vmatpush2.msra.mxu0 0.0
    %99 = vmatprep.mubr.f32.mxu0 0.0
    %100 = vmatmul.mubr.f32.gmra.mxu0 %v33
    %v101 = vpop.f32.mrf.mxu0
    %v102 = vadd.f32 %v29, %v101
    %v103 = vpop.f32.mrf.mxu0
    %104 = vdwg.mxu0
    %v105 = vmax.f32 %v102, 0.0
    %v106 = vld [vmem:[%s3] sm:$0xff]
    %v107 = vld [vmem:[%s3 + $0x8] sm:$0xff]
    %v108 = vld [vmem:[%s3 + $0x10] sm:$0xff]
    %v109 = vld [vmem:[%s3 + $0x18] sm:$0xff]
    %v110 = vld [vmem:[%s3 + $0x20] sm:$0xff]
    %v111 = vld [vmem:[%s3 + $0x28] sm:$0xff]
    %v112 = vld [vmem:[%s3 + $0x30] sm:$0xff]
    %v113 = vld [vmem:[%s3 + $0x38] sm:$0xf]
    %v114 = vld [vmem:[%s4] sm:$0x1]
    %v116 = vlaneseq
    %v117 = vshrl.u32 %v116, 7
    %v118 = vsub.s32 0, %v117
    %v119 = vrot.slane %v114, %v118
    %vm121 = vcmask 490496
    %v123 = vsel %vm121, %v105, 0
    %vm125 = vcmask 1043456
    %v127 = vsel %vm125, %v113, 0
    %129 = vmatprep.subr.mxu0 0.0
    %130 = vmatpush1.msra.mxu0 0.0
    %131 = vmatprep.subr.mxu0 0.0
    %132 = vmatpush1.msra.mxu0 0.0
    %133 = vmatprep.subr.mxu0 0.0
    %134 = vmatpush1.msra.mxu0 0.0
    %135 = vmatprep.subr.mxu0 0.0
    %136 = vmatpush1.msra.mxu0 0.0
    %137 = vmatprep.subr.mxu0 0.0
    %138 = vmatpush1.msra.mxu0 0.0
    %139 = vmatprep.subr.mxu0 0.0
    %140 = vmatpush1.msra.mxu0 0.0
    %141 = vmatprep.subr.mxu0 0.0
    %142 = vmatpush1.msra.mxu0 0.0
    %143 = vmatprep.subr.mxu0 0.0
    %144 = vmatpush1.msra.mxu0 0.0
    %145 = vmatprep.subr.mxu0 0.0
    %146 = vmatpush1.msra.mxu0 %v127
    %147 = vmatprep.subr.mxu0 0.0
    %148 = vmatpush1.msra.mxu0 %v112
    %149 = vmatprep.subr.mxu0 0.0
    %150 = vmatpush1.msra.mxu0 %v111
    %151 = vmatprep.subr.mxu0 0.0
    %152 = vmatpush1.msra.mxu0 %v110
    %153 = vmatprep.subr.mxu0 0.0
    %154 = vmatpush1.msra.mxu0 %v109
    %155 = vmatprep.subr.mxu0 0.0
    %156 = vmatpush1.msra.mxu0 %v108
    %157 = vmatprep.subr.mxu0 0.0
    %158 = vmatpush1.msra.mxu0 %v107
    %159 = vmatprep.subr.mxu0 0.0
    %160 = vmatpush1.msra.mxu0 %v106
    %161 = vmatprep.subr.mxu0 0.0
    %162 = vmatpush2.msra.mxu0 0.0
    %163 = vmatprep.subr.mxu0 0.0
    %164 = vmatpush2.msra.mxu0 0.0
    %165 = vmatprep.subr.mxu0 0.0
    %166 = vmatpush2.msra.mxu0 0.0
    %167 = vmatprep.subr.mxu0 0.0
    %168 = vmatpush2.msra.mxu0 0.0
    %169 = vmatprep.subr.mxu0 0.0
    %170 = vmatpush2.msra.mxu0 0.0
    %171 = vmatprep.subr.mxu0 0.0
    %172 = vmatpush2.msra.mxu0 0.0
    %173 = vmatprep.subr.mxu0 0.0
    %174 = vmatpush2.msra.mxu0 0.0
    %175 = vmatprep.subr.mxu0 0.0
    %176 = vmatpush2.msra.mxu0 0.0
    %177 = vmatprep.subr.mxu0 0.0
    %178 = vmatpush2.msra.mxu0 0.0
    %179 = vmatprep.subr.mxu0 0.0
    %180 = vmatpush2.msra.mxu0 0.0
    %181 = vmatprep.subr.mxu0 0.0
    %182 = vmatpush2.msra.mxu0 0.0
    %183 = vmatprep.subr.mxu0 0.0
    %184 = vmatpush2.msra.mxu0 0.0
    %185 = vmatprep.subr.mxu0 0.0
    %186 = vmatpush2.msra.mxu0 0.0
    %187 = vmatprep.subr.mxu0 0.0
    %188 = vmatpush2.msra.mxu0 0.0
    %189 = vmatprep.subr.mxu0 0.0
    %190 = vmatpush2.msra.mxu0 0.0
    %191 = vmatprep.subr.mxu0 0.0
    %192 = vmatpush2.msra.mxu0 0.0
    %193 = vmatprep.mubr.f32.mxu0 0.0
    %194 = vmatmul.mubr.f32.gmra.mxu0 %v123
    %v195 = vpop.f32.mrf.mxu0
    %v196 = vadd.f32 %v119, %v195
    %v197 = vpop.f32.mrf.mxu0
    %198 = vdwg.mxu0
    %v199 = vtanh.pop %v196
    %v200 = vmul.f32 %v199, 2.0
    %vm201 = vcmask 64512
    %202 = vst.msk [vmem:[#allocation2] sm:$0xff] %vm201, %v200
    // Predicated region
    $region22: #{tpu_custom_call.1} parent=1 // pred_check
      _
    $region23: #{tpu_custom_call.1} parent=1 // pred_check_branch
      %204 = sbr.rel (0) target = $region25
    $region24: #{tpu_custom_call.1} parent=1 // pred_region
      %s206 = ssub.s32 128, 128
      %207 = vsyncadd [#allocation3], %s206
      %s209 = sshll.u32 [#allocation2], 4
      %s210 = int_to_ptr.vmem [resolvable:$true] %s209
      %212 = dma.vmem_to_hbm [thread:$0]  %s210, 128, %s5, [#allocation3]
    $region25: #{tpu_custom_call.1} parent=1 // pred_fallthru
      _
    // Predicated region
    $region26: #{tpu_custom_call.1} parent=1 // pred_check
      _
    $region27: #{tpu_custom_call.1} parent=1 // pred_check_branch
      %214 = sbr.rel (0) target = $region29
    $region28: #{tpu_custom_call.1} parent=1 // pred_region
      %215 = dma.done [#allocation3], 128
    $region29: #{tpu_custom_call.1} parent=1 // pred_fallthru
      _
    %216 = vsyncpa [#allocation3], 1

</llo_original>
